<compile_context>
chip_gen: v6e
topology: v6e:2x2x1
jax: 0.10.0
libtpu: 0.0.40
codegen_flags: <defaults>
</compile_context>

<pallas_src>
import jax
import jax.numpy as jnp
from jax.experimental import pallas as pl
from jax.experimental.pallas import tpu as pltpu

HIDDEN = 32  # A3TGCN out_channels


def gcn_norm_dense(edge_index, num_nodes):
    """Dense equivalent of PyG gcn_norm: D^-1/2 (A + I) D^-1/2, A[dst, src] = 1."""
    src, dst = edge_index[0], edge_index[1]
    a = jnp.zeros((num_nodes, num_nodes), jnp.float32)
    a = a.at[dst, src].add(1.0)
    a = a + jnp.eye(num_nodes, dtype=jnp.float32)  # add self-loops
    deg = jnp.sum(a, axis=1)
    d_inv_sqrt = 1.0 / jnp.sqrt(deg)
    return d_inv_sqrt[:, None] * a * d_inv_sqrt[None, :]


def tgnn_fused_kernel(x_ref, a_ref, wzh_ref, bzh_ref, s_ref, wlin_ref, blin_ref, out_ref):
    """Single-shot fused A3TGCN + ReLU + Linear.

    x_ref    : (N, T*F)        period-major flattened node features
    a_ref    : (N, N)          symmetric-normalized dense adjacency
    wzh_ref  : (T*F, 2*T*H)    block-diag fused GCN+gate weights, [z | h] halves
    bzh_ref  : (1, 2*T*H)      fused biases, [z | h] halves
    s_ref    : (T*H, H)        softmax(attention)-weighted period-sum matrix
    wlin_ref : (H, P128)       final Linear weight, zero-padded to 128 lanes
    blin_ref : (1, P128)       final Linear bias, zero-padded
    out_ref  : (N, P128)
    """
    th = s_ref.shape[0]  # T * HIDDEN

    # All periods / both gates in two MXU passes.
    xw = jnp.dot(x_ref[...], wzh_ref[...], preferred_element_type=jnp.float32)   # (N, 2*T*H)
    pre = jnp.dot(a_ref[...], xw, preferred_element_type=jnp.float32) + bzh_ref[...]

    z = jax.nn.sigmoid(pre[:, :th])        # (N, T*H)
    h_tilde = jnp.tanh(pre[:, th:])        # (N, T*H)
    h_cell = (1.0 - z) * h_tilde           # H=None each period => h_cell = (1-z)*h_tilde

    # Attention-weighted sum over periods as one matmul (no in-kernel reshape).
    hacc = jnp.dot(h_cell, s_ref[...], preferred_element_type=jnp.float32)       # (N, H)

    h = jnp.maximum(hacc, 0.0)             # ReLU
    out_ref[...] = (jnp.dot(h, wlin_ref[...], preferred_element_type=jnp.float32)
                    + blin_ref[...])


def temporal_gnn_pallas(x, edge_index, params):
    """x: (N, F, T) as in PyTorch A3TGCN.  Returns (N, T)."""
    N, F, T = x.shape
    hid = HIDDEN
    f32 = jnp.float32

    a_norm = gcn_norm_dense(edge_index, N)

    # (N, F, T) -> (N, T*F): column block t holds x[:, :, t].
    x_all = jnp.transpose(x, (0, 2, 1)).reshape(N, T * F)

    # Pre-fuse GCN and gate weights (valid because the hidden state is zero every period):
    #   gate_t = A @ (X_t @ (W @ Lw[:H])) + (b @ Lw[:H] + Lb)
    wz_f = params["wz"] @ params["lwz"][:hid]                 # (F, H)
    bz_f = params["bz"] @ params["lwz"][:hid] + params["lbz"]  # (H,)
    wh_f = params["wh"] @ params["lwh"][:hid]
    bh_f = params["bh"] @ params["lwh"][:hid] + params["lbh"]

    # Block-diagonal over periods so one matmul does every X_t @ W' at once.
    eye_t = jnp.eye(T, dtype=f32)
    w_zh = jnp.concatenate([jnp.kron(eye_t, wz_f), jnp.kron(eye_t, wh_f)], axis=1)  # (T*F, 2*T*H)
    b_zh = jnp.concatenate([jnp.tile(bz_f, T), jnp.tile(bh_f, T)]).reshape(1, 2 * T * hid)

    # Attention softmax folded into the period-sum matrix: S = kron(probs, I_H).
    probs = jax.nn.softmax(params["attention"])
    s_mat = jnp.kron(probs[:, None], jnp.eye(hid, dtype=f32))  # (T*H, H)

    # Lane-dense output: pad final Linear to a multiple of 128 output columns.
    out_cols = -(-T // 128) * 128
    wlin_pad = jnp.zeros((hid, out_cols), f32).at[:, :T].set(params["wlin"])
    blin_pad = jnp.zeros((1, out_cols), f32).at[:, :T].set(params["blin"].reshape(1, T))

    out_pad = pl.pallas_call(
        tgnn_fused_kernel,
        out_shape=jax.ShapeDtypeStruct((N, out_cols), f32),
        in_specs=[pl.BlockSpec(memory_space=pltpu.MemorySpace.VMEM)] * 7,
        out_specs=pl.BlockSpec(memory_space=pltpu.MemorySpace.VMEM),
    )(x_all, a_norm, w_zh, b_zh, s_mat, wlin_pad, blin_pad)

    return out_pad[:, :T]


def temporal_gnn_reference(x, edge_index, params):
    """Pure-JAX reference with the FULL (un-simplified) TGCN-cell math for verification."""
    N, F, T = x.shape
    hid = HIDDEN
    a = gcn_norm_dense(edge_index, N)
    probs = jax.nn.softmax(params["attention"])
    hacc = jnp.zeros((N, hid), jnp.float32)
    h0 = jnp.zeros((N, hid), jnp.float32)  # A3TGCN passes H=None every period
    for t in range(T):
        xt = x[:, :, t]
        cz = a @ (xt @ params["wz"]) + params["bz"]
        cr = a @ (xt @ params["wr"]) + params["br"]
        ch = a @ (xt @ params["wh"]) + params["bh"]
        z = jax.nn.sigmoid(cz @ params["lwz"][:hid] + h0 @ params["lwz"][hid:] + params["lbz"])
        r = jax.nn.sigmoid(cr @ params["lwr"][:hid] + h0 @ params["lwr"][hid:] + params["lbr"])
        ht = jnp.tanh(ch @ params["lwh"][:hid] + (h0 * r) @ params["lwh"][hid:] + params["lbh"])
        hcell = z * h0 + (1.0 - z) * ht
        hacc = hacc + probs[t] * hcell
    h = jnp.maximum(hacc, 0.0)
    return h @ params["wlin"] + params["blin"]


if __name__ == "__main__":
    N, F, T = 16, 4, 8  # nodes, node_features, periods
    key = jax.random.PRNGKey(0)
    ks = jax.random.split(key, 20)

    x = jax.random.normal(ks[0], (N, F, T), jnp.float32)

    # deterministic bidirectional ring graph
    src = jnp.arange(N, dtype=jnp.int32)
    dst = (src + 1) % N
    edge_index = jnp.stack([jnp.concatenate([src, dst]),
                            jnp.concatenate([dst, src])], axis=0)

    params = {
        "attention": jax.random.uniform(ks[1], (T,), jnp.float32),
        "wz": 0.2 * jax.random.normal(ks[2], (F, HIDDEN), jnp.float32),
        "wr": 0.2 * jax.random.normal(ks[3], (F, HIDDEN), jnp.float32),
        "wh": 0.2 * jax.random.normal(ks[4], (F, HIDDEN), jnp.float32),
        "bz": 0.1 * jax.random.normal(ks[5], (HIDDEN,), jnp.float32),
        "br": 0.1 * jax.random.normal(ks[6], (HIDDEN,), jnp.float32),
        "bh": 0.1 * jax.random.normal(ks[7], (HIDDEN,), jnp.float32),
        "lwz": 0.1 * jax.random.normal(ks[8], (2 * HIDDEN, HIDDEN), jnp.float32),
        "lwr": 0.1 * jax.random.normal(ks[9], (2 * HIDDEN, HIDDEN), jnp.float32),
        "lwh": 0.1 * jax.random.normal(ks[10], (2 * HIDDEN, HIDDEN), jnp.float32),
        "lbz": 0.1 * jax.random.normal(ks[11], (HIDDEN,), jnp.float32),
        "lbr": 0.1 * jax.random.normal(ks[12], (HIDDEN,), jnp.float32),
        "lbh": 0.1 * jax.random.normal(ks[13], (HIDDEN,), jnp.float32),
        "wlin": 0.2 * jax.random.normal(ks[14], (HIDDEN, T), jnp.float32),
        "blin": 0.1 * jax.random.normal(ks[15], (T,), jnp.float32),
    }

    out = temporal_gnn_pallas(x, edge_index, params)
    out = jax.block_until_ready(out)

    ref = temporal_gnn_reference(x, edge_index, params)
    assert out.shape == (N, T)
    assert jnp.max(jnp.abs(out - ref)) < 1e-3, "kernel/reference mismatch"

    print("KERNEL_OK")
</pallas_src>

<mosaic_0001>
module attributes {stable_mosaic.version = 11 : i64} {
  func.func @tgnn_fused_kernel(%arg0: memref<16x32xf32, #tpu.memory_space<vmem>>, %arg1: memref<16x16xf32, #tpu.memory_space<vmem>>, %arg2: memref<32x512xf32, #tpu.memory_space<vmem>>, %arg3: memref<1x512xf32, #tpu.memory_space<vmem>>, %arg4: memref<256x32xf32, #tpu.memory_space<vmem>>, %arg5: memref<32x128xf32, #tpu.memory_space<vmem>>, %arg6: memref<1x128xf32, #tpu.memory_space<vmem>>, %arg7: memref<16x128xf32, #tpu.memory_space<vmem>>) attributes {dimension_semantics = [], scalar_prefetch = 0 : i64, scratch_operands = 0 : i64, tpu.core_type = #tpu.core_type<tc>} {
    %c0 = arith.constant 0 : index
    %c0_0 = arith.constant 0 : index
    %0 = vector.load %arg0[%c0, %c0_0] : memref<16x32xf32, #tpu.memory_space<vmem>>, vector<16x32xf32>
    %c0_1 = arith.constant 0 : index
    %c0_2 = arith.constant 0 : index
    %1 = vector.load %arg2[%c0_1, %c0_2] : memref<32x512xf32, #tpu.memory_space<vmem>>, vector<32x512xf32>
    %cst = arith.constant dense<0.000000e+00> : vector<16x512xf32>
    %2 = tpu.matmul %0, %1, %cst {dimension_numbers = #tpu.dot_dimension_numbers<[1], [0], [0], [1], [0, 0, 1, 1], [], []>} : vector<16x32xf32>, vector<32x512xf32>, vector<16x512xf32> -> vector<16x512xf32>
    %c0_3 = arith.constant 0 : index
    %c0_4 = arith.constant 0 : index
    %3 = vector.load %arg1[%c0_3, %c0_4] : memref<16x16xf32, #tpu.memory_space<vmem>>, vector<16x16xf32>
    %cst_5 = arith.constant dense<0.000000e+00> : vector<16x512xf32>
    %4 = tpu.matmul %3, %2, %cst_5 {dimension_numbers = #tpu.dot_dimension_numbers<[1], [0], [0], [1], [0, 0, 1, 1], [], []>} : vector<16x16xf32>, vector<16x512xf32>, vector<16x512xf32> -> vector<16x512xf32>
    %c0_6 = arith.constant 0 : index
    %c0_7 = arith.constant 0 : index
    %5 = vector.load %arg3[%c0_6, %c0_7] : memref<1x512xf32, #tpu.memory_space<vmem>>, vector<1x512xf32>
    %6 = vector.broadcast %5 : vector<1x512xf32> to vector<16x512xf32>
    %7 = arith.addf %4, %6 : vector<16x512xf32>
    %8 = vector.extract_strided_slice %7 {offsets = [0, 0], sizes = [16, 256], strides = [1, 1]} : vector<16x512xf32> to vector<16x256xf32>
    %9 = arith.negf %8 : vector<16x256xf32>
    %10 = math.exp %9 : vector<16x256xf32>
    %cst_8 = arith.constant 1.000000e+00 : f32
    %11 = vector.broadcast %cst_8 : f32 to vector<16x256xf32>
    %12 = arith.addf %11, %10 : vector<16x256xf32>
    %13 = arith.divf %11, %12 : vector<16x256xf32>
    %14 = vector.extract_strided_slice %7 {offsets = [0, 256], sizes = [16, 256], strides = [1, 1]} : vector<16x512xf32> to vector<16x256xf32>
    %15 = math.tanh %14 : vector<16x256xf32>
    %cst_9 = arith.constant 1.000000e+00 : f32
    %16 = vector.broadcast %cst_9 : f32 to vector<16x256xf32>
    %17 = arith.subf %16, %13 : vector<16x256xf32>
    %18 = arith.mulf %17, %15 : vector<16x256xf32>
    %c0_10 = arith.constant 0 : index
    %c0_11 = arith.constant 0 : index
    %19 = vector.load %arg4[%c0_10, %c0_11] : memref<256x32xf32, #tpu.memory_space<vmem>>, vector<256x32xf32>
    %cst_12 = arith.constant dense<0.000000e+00> : vector<16x32xf32>
    %20 = tpu.matmul %18, %19, %cst_12 {dimension_numbers = #tpu.dot_dimension_numbers<[1], [0], [0], [1], [0, 0, 1, 1], [], []>} : vector<16x256xf32>, vector<256x32xf32>, vector<16x32xf32> -> vector<16x32xf32>
    %cst_13 = arith.constant 0.000000e+00 : f32
    %21 = vector.broadcast %cst_13 : f32 to vector<16x32xf32>
    %22 = arith.maximumf %20, %21 : vector<16x32xf32>
    %c0_14 = arith.constant 0 : index
    %c0_15 = arith.constant 0 : index
    %23 = vector.load %arg5[%c0_14, %c0_15] : memref<32x128xf32, #tpu.memory_space<vmem>>, vector<32x128xf32>
    %cst_16 = arith.constant dense<0.000000e+00> : vector<16x128xf32>
    %24 = tpu.matmul %22, %23, %cst_16 {dimension_numbers = #tpu.dot_dimension_numbers<[1], [0], [0], [1], [0, 0, 1, 1], [], []>} : vector<16x32xf32>, vector<32x128xf32>, vector<16x128xf32> -> vector<16x128xf32>
    %c0_17 = arith.constant 0 : index
    %c0_18 = arith.constant 0 : index
    %25 = vector.load %arg6[%c0_17, %c0_18] : memref<1x128xf32, #tpu.memory_space<vmem>>, vector<1x128xf32>
    %26 = vector.broadcast %25 : vector<1x128xf32> to vector<16x128xf32>
    %27 = arith.addf %24, %26 : vector<16x128xf32>
    %c0_19 = arith.constant 0 : index
    %c0_20 = arith.constant 0 : index
    %28 = vector.load %arg7[%c0_19, %c0_20] : memref<16x128xf32, #tpu.memory_space<vmem>>, vector<16x128xf32>
    tpu.vector_store %arg7[%c0_19, %c0_20], %27 {strides = array<i32>} : memref<16x128xf32, #tpu.memory_space<vmem>>, vector<16x128xf32>,
    return
  }
}

</mosaic_0001>

<llo_original>
// kernel: tpu_custom_call.1
$region0: #{tpu_custom_call.1}
  #allocation0 [shape = 'u32[]', space=smem, size = 0x4, offset = 0x4, fixed_abs, tag = 'smem constant byte address 0x4 - core index']
  #allocation1 [shape = 'u32[144,128]{1,0:T(1,128)}', space=vmem, size = 0x12000, scoped, tag = 'internal scratch']
  %s0 = inlined_call_operand.vmem [shape: f32[16,32], index: 0, kind: input, shape index: {}]
  %s1 = inlined_call_operand.vmem [shape: f32[16,16], index: 1, kind: input, shape index: {}]
  %s2 = inlined_call_operand.vmem [shape: f32[32,512], index: 2, kind: input, shape index: {}]
  %s3 = inlined_call_operand.vmem [shape: f32[1,512], index: 3, kind: input, shape index: {}]
  %s4 = inlined_call_operand.vmem [shape: f32[256,32], index: 4, kind: input, shape index: {}]
  %s5 = inlined_call_operand.vmem [shape: f32[32,128], index: 5, kind: input, shape index: {}]
  %s6 = inlined_call_operand.vmem [shape: f32[1,128], index: 6, kind: input, shape index: {}]
  %s7 = inlined_call_operand.hbm [shape: f32[16,128], index: 7, kind: output, shape index: {}]
  %s8 = sld [smem:[#allocation0]]
  $region38: #{tpu_custom_call.1} parent=0
    _
  %s10 = ssub.s32 1, %s8
  %s11 = scalar_select 0, %s10, %s8
  $region1: #{tpu_custom_call.1} parent=0
    #allocation2 [shape = 'u8[8192]{0}', space=vmem, size = 0x2000, scoped, tag = 'output window, operand 0, single buffered']
    #allocation3 [shape = 's32[1]{0}', space=sflag, size = 0x4, scoped, tag = 'scoped memory for tpu_custom_call.1']
    %12 = vsyncpa [#allocation3], 0
    // Predicated region
    $region2: #{tpu_custom_call.1} parent=1 // pred_check
      _
    $region3: #{tpu_custom_call.1} parent=1 // pred_check_branch
      %14 = sbr.rel (0) target = $region5
    $region4: #{tpu_custom_call.1} parent=1 // pred_region
      _
    $region5: #{tpu_custom_call.1} parent=1 // pred_fallthru
      _
    // Predicated region
    $region6: #{tpu_custom_call.1} parent=1 // pred_check
      _
    $region7: #{tpu_custom_call.1} parent=1 // pred_check_branch
      %16 = sbr.rel (0) target = $region9
    $region8: #{tpu_custom_call.1} parent=1 // pred_region
      _
    $region9: #{tpu_custom_call.1} parent=1 // pred_fallthru
      _
    // Predicated region
    $region10: #{tpu_custom_call.1} parent=1 // pred_check
      _
    $region11: #{tpu_custom_call.1} parent=1 // pred_check_branch
      %18 = sbr.rel (0) target = $region13
    $region12: #{tpu_custom_call.1} parent=1 // pred_region
      _
    $region13: #{tpu_custom_call.1} parent=1 // pred_fallthru
      _
    // Predicated region
    $region14: #{tpu_custom_call.1} parent=1 // pred_check
      _
    $region15: #{tpu_custom_call.1} parent=1 // pred_check_branch
      %20 = sbr.rel (0) target = $region17
    $region16: #{tpu_custom_call.1} parent=1 // pred_region
      _
    $region17: #{tpu_custom_call.1} parent=1 // pred_fallthru
      _
    // Predicated region
    $region18: #{tpu_custom_call.1} parent=1 // pred_check
      _
    $region19: #{tpu_custom_call.1} parent=1 // pred_check_branch
      %22 = sbr.rel (0) target = $region21
    $region20: #{tpu_custom_call.1} parent=1 // pred_region
      _
    $region21: #{tpu_custom_call.1} parent=1 // pred_fallthru
      _
    // Predicated region
    $region22: #{tpu_custom_call.1} parent=1 // pred_check
      _
    $region23: #{tpu_custom_call.1} parent=1 // pred_check_branch
      %24 = sbr.rel (0) target = $region25
    $region24: #{tpu_custom_call.1} parent=1 // pred_region
      _
    $region25: #{tpu_custom_call.1} parent=1 // pred_fallthru
      _
    // Predicated region
    $region26: #{tpu_custom_call.1} parent=1 // pred_check
      _
    $region27: #{tpu_custom_call.1} parent=1 // pred_check_branch
      %26 = sbr.rel (0) target = $region29
    $region28: #{tpu_custom_call.1} parent=1 // pred_region
      _
    $region29: #{tpu_custom_call.1} parent=1 // pred_fallthru
      _
    %v27 = vld [vmem:[%s0] sm:$0xff]
    %v28 = vld [vmem:[%s0 + $0x8] sm:$0xff]
    %v29 = vld [vmem:[%s2] sm:$0xff]
    %v30 = vld [vmem:[%s2 + $0x8] sm:$0xff]
    %v31 = vld [vmem:[%s2 + $0x10] sm:$0xff]
    %v32 = vld [vmem:[%s2 + $0x18] sm:$0xff]
    %v33 = vld [vmem:[%s2 + $0x20] sm:$0xff]
    %v34 = vld [vmem:[%s2 + $0x28] sm:$0xff]
    %v35 = vld [vmem:[%s2 + $0x30] sm:$0xff]
    %v36 = vld [vmem:[%s2 + $0x38] sm:$0xff]
    %v37 = vld [vmem:[%s2 + $0x40] sm:$0xff]
    %v38 = vld [vmem:[%s2 + $0x48] sm:$0xff]
    %v39 = vld [vmem:[%s2 + $0x50] sm:$0xff]
    %v40 = vld [vmem:[%s2 + $0x58] sm:$0xff]
    %v41 = vld [vmem:[%s2 + $0x60] sm:$0xff]
    %v42 = vld [vmem:[%s2 + $0x68] sm:$0xff]
    %v43 = vld [vmem:[%s2 + $0x70] sm:$0xff]
    %v44 = vld [vmem:[%s2 + $0x78] sm:$0xff]
    %vm45 = vcmask 261120
    %v47 = vsel %vm45, %v27, 0
    %v50 = vsel %vm45, %v28, 0
    %52 = vmatprep.subr.mxu0 0.0
    %53 = vmatpush1.msra.mxu0 0.0
    %54 = vmatprep.subr.mxu0 0.0
    %55 = vmatpush1.msra.mxu0 0.0
    %56 = vmatprep.subr.mxu0 0.0
    %57 = vmatpush1.msra.mxu0 0.0
    %58 = vmatprep.subr.mxu0 0.0
    %59 = vmatpush1.msra.mxu0 0.0
    %60 = vmatprep.subr.mxu0 0.0
    %61 = vmatpush1.msra.mxu0 0.0
    %62 = vmatprep.subr.mxu0 0.0
    %63 = vmatpush1.msra.mxu0 0.0
    %64 = vmatprep.subr.mxu0 0.0
    %65 = vmatpush1.msra.mxu0 0.0
    %66 = vmatprep.subr.mxu0 0.0
    %67 = vmatpush1.msra.mxu0 0.0
    %68 = vmatprep.subr.mxu0 0.0
    %69 = vmatpush1.msra.mxu0 0.0
    %70 = vmatprep.subr.mxu0 0.0
    %71 = vmatpush1.msra.mxu0 0.0
    %72 = vmatprep.subr.mxu0 0.0
    %73 = vmatpush1.msra.mxu0 0.0
    %74 = vmatprep.subr.mxu0 0.0
    %75 = vmatpush1.msra.mxu0 0.0
    %76 = vmatprep.subr.mxu0 %v42
    %77 = vmatpush1.msra.mxu0 %v41
    %78 = vmatprep.subr.mxu0 %v38
    %79 = vmatpush1.msra.mxu0 %v37
    %80 = vmatprep.subr.mxu0 %v34
    %81 = vmatpush1.msra.mxu0 %v33
    %82 = vmatprep.subr.mxu0 %v30
    %83 = vmatpush1.msra.mxu0 %v29
    %84 = vmatprep.subr.mxu0 0.0
    %85 = vmatpush2.msra.mxu0 0.0
    %86 = vmatprep.subr.mxu0 0.0
    %87 = vmatpush2.msra.mxu0 0.0
    %88 = vmatprep.subr.mxu0 0.0
    %89 = vmatpush2.msra.mxu0 0.0
    %90 = vmatprep.subr.mxu0 0.0
    %91 = vmatpush2.msra.mxu0 0.0
    %92 = vmatprep.subr.mxu0 0.0
    %93 = vmatpush2.msra.mxu0 0.0
    %94 = vmatprep.subr.mxu0 0.0
    %95 = vmatpush2.msra.mxu0 0.0
    %96 = vmatprep.subr.mxu0 0.0
    %97 = vmatpush2.msra.mxu0 0.0
    %98 = vmatprep.subr.mxu0 0.0
    %99 = vmatpush2.msra.mxu0 0.0
    %100 = vmatprep.subr.mxu0 0.0
    %101 = vmatpush2.msra.mxu0 0.0
    %102 = vmatprep.subr.mxu0 0.0
    %103 = vmatpush2.msra.mxu0 0.0
    %104 = vmatprep.subr.mxu0 0.0
    %105 = vmatpush2.msra.mxu0 0.0
    %106 = vmatprep.subr.mxu0 0.0
    %107 = vmatpush2.msra.mxu0 0.0
    %108 = vmatprep.subr.mxu0 0.0
    %109 = vmatpush2.msra.mxu0 0.0
    %110 = vmatprep.subr.mxu0 0.0
    %111 = vmatpush2.msra.mxu0 0.0
    %112 = vmatprep.subr.mxu0 0.0
    %113 = vmatpush2.msra.mxu0 0.0
    %114 = vmatprep.subr.mxu0 0.0
    %115 = vmatpush2.msra.mxu0 0.0
    %116 = vmatprep.mubr.f32.mxu0 0.0
    %117 = vmatmul.mubr.f32.gmra.mxu0 %v47
    %v118 = vpop.f32.mrf.mxu0
    %v119 = vadd.f32 0.0, %v118
    %v120 = vpop.f32.mrf.mxu0
    %v121 = vadd.f32 0.0, %v120
    %122 = vmatprep.mubr.f32.mxu0 0.0
    %123 = vmatmul.mubr.f32.gmra.mxu0 %v50
    %v124 = vpop.f32.mrf.mxu0
    %v125 = vadd.f32 0.0, %v124
    %v126 = vpop.f32.mrf.mxu0
    %v127 = vadd.f32 0.0, %v126
    %128 = vdwg.mxu0
    %129 = vmatprep.subr.mxu0 0.0
    %130 = vmatpush1.msra.mxu0 0.0
    %131 = vmatprep.subr.mxu0 0.0
    %132 = vmatpush1.msra.mxu0 0.0
    %133 = vmatprep.subr.mxu0 0.0
    %134 = vmatpush1.msra.mxu0 0.0
    %135 = vmatprep.subr.mxu0 0.0
    %136 = vmatpush1.msra.mxu0 0.0
    %137 = vmatprep.subr.mxu0 0.0
    %138 = vmatpush1.msra.mxu0 0.0
    %139 = vmatprep.subr.mxu0 0.0
    %140 = vmatpush1.msra.mxu0 0.0
    %141 = vmatprep.subr.mxu0 0.0
    %142 = vmatpush1.msra.mxu0 0.0
    %143 = vmatprep.subr.mxu0 0.0
    %144 = vmatpush1.msra.mxu0 0.0
    %145 = vmatprep.subr.mxu0 0.0
    %146 = vmatpush1.msra.mxu0 0.0
    %147 = vmatprep.subr.mxu0 0.0
    %148 = vmatpush1.msra.mxu0 0.0
    %149 = vmatprep.subr.mxu0 0.0
    %150 = vmatpush1.msra.mxu0 0.0
    %151 = vmatprep.subr.mxu0 0.0
    %152 = vmatpush1.msra.mxu0 0.0
    %153 = vmatprep.subr.mxu0 %v44
    %154 = vmatpush1.msra.mxu0 %v43
    %155 = vmatprep.subr.mxu0 %v40
    %156 = vmatpush1.msra.mxu0 %v39
    %157 = vmatprep.subr.mxu0 %v36
    %158 = vmatpush1.msra.mxu0 %v35
    %159 = vmatprep.subr.mxu0 %v32
    %160 = vmatpush1.msra.mxu0 %v31
    %161 = vmatprep.subr.mxu0 0.0
    %162 = vmatpush2.msra.mxu0 0.0
    %163 = vmatprep.subr.mxu0 0.0
    %164 = vmatpush2.msra.mxu0 0.0
    %165 = vmatprep.subr.mxu0 0.0
    %166 = vmatpush2.msra.mxu0 0.0
    %167 = vmatprep.subr.mxu0 0.0
    %168 = vmatpush2.msra.mxu0 0.0
    %169 = vmatprep.subr.mxu0 0.0
    %170 = vmatpush2.msra.mxu0 0.0
    %171 = vmatprep.subr.mxu0 0.0
    %172 = vmatpush2.msra.mxu0 0.0
    %173 = vmatprep.subr.mxu0 0.0
    %174 = vmatpush2.msra.mxu0 0.0
    %175 = vmatprep.subr.mxu0 0.0
    %176 = vmatpush2.msra.mxu0 0.0
    %177 = vmatprep.subr.mxu0 0.0
    %178 = vmatpush2.msra.mxu0 0.0
    %179 = vmatprep.subr.mxu0 0.0
    %180 = vmatpush2.msra.mxu0 0.0
    %181 = vmatprep.subr.mxu0 0.0
    %182 = vmatpush2.msra.mxu0 0.0
    %183 = vmatprep.subr.mxu0 0.0
    %184 = vmatpush2.msra.mxu0 0.0
    %185 = vmatprep.subr.mxu0 0.0
    %186 = vmatpush2.msra.mxu0 0.0
    %187 = vmatprep.subr.mxu0 0.0
    %188 = vmatpush2.msra.mxu0 0.0
    %189 = vmatprep.subr.mxu0 0.0
    %190 = vmatpush2.msra.mxu0 0.0
    %191 = vmatprep.subr.mxu0 0.0
    %192 = vmatpush2.msra.mxu0 0.0
    %193 = vmatprep.mubr.f32.mxu0 0.0
    %194 = vmatmul.mubr.f32.gmra.mxu0 %v47
    %v195 = vpop.f32.mrf.mxu0
    %v196 = vadd.f32 0.0, %v195
    %v197 = vpop.f32.mrf.mxu0
    %v198 = vadd.f32 0.0, %v197
    %199 = vmatprep.mubr.f32.mxu0 0.0
    %200 = vmatmul.mubr.f32.gmra.mxu0 %v50
    %v201 = vpop.f32.mrf.mxu0
    %v202 = vadd.f32 0.0, %v201
    %v203 = vpop.f32.mrf.mxu0
    %v204 = vadd.f32 0.0, %v203
    %205 = vdwg.mxu0
    %v206 = vld [vmem:[%s1] sm:$0xff]
    %v207 = vld [vmem:[%s1 + $0x8] sm:$0xff]
    %v208 = vld [vmem:[%s3] sm:$0xf]
    %v210 = vlaneseq
    %v211 = vshrl.u32 %v210, 7
    %v212 = vsub.s32 0, %v211
    %v213 = vrot.slane %v208, %v212
    %v214 = vlaneseq
    %v215 = vshrl.u32 %v214, 7
    %v216 = vsub.s32 1, %v215
    %v217 = vrot.slane %v208, %v216
    %v218 = vlaneseq
    %v219 = vshrl.u32 %v218, 7
    %v220 = vsub.s32 2, %v219
    %v221 = vrot.slane %v208, %v220
    %v222 = vlaneseq
    %v223 = vshrl.u32 %v222, 7
    %v224 = vsub.s32 3, %v223
    %v225 = vrot.slane %v208, %v224
    %vm230 = vcmask 130048
    %v232 = vsel %vm230, %v206, 0
    %v235 = vsel %vm230, %v207, 0
    %237 = vmatprep.subr.mxu0 0.0
    %238 = vmatpush1.msra.mxu0 0.0
    %239 = vmatprep.subr.mxu0 0.0
    %240 = vmatpush1.msra.mxu0 0.0
    %241 = vmatprep.subr.mxu0 0.0
    %242 = vmatpush1.msra.mxu0 0.0
    %243 = vmatprep.subr.mxu0 0.0
    %244 = vmatpush1.msra.mxu0 0.0
    %245 = vmatprep.subr.mxu0 0.0
    %246 = vmatpush1.msra.mxu0 0.0
    %247 = vmatprep.subr.mxu0 0.0
    %248 = vmatpush1.msra.mxu0 0.0
    %249 = vmatprep.subr.mxu0 0.0
    %250 = vmatpush1.msra.mxu0 0.0
    %251 = vmatprep.subr.mxu0 0.0
    %252 = vmatpush1.msra.mxu0 0.0
    %253 = vmatprep.subr.mxu0 0.0
    %254 = vmatpush1.msra.mxu0 0.0
    %255 = vmatprep.subr.mxu0 0.0
    %256 = vmatpush1.msra.mxu0 0.0
    %257 = vmatprep.subr.mxu0 0.0
    %258 = vmatpush1.msra.mxu0 0.0
    %259 = vmatprep.subr.mxu0 0.0
    %260 = vmatpush1.msra.mxu0 0.0
    %261 = vmatprep.subr.mxu0 0.0
    %262 = vmatpush1.msra.mxu0 0.0
    %263 = vmatprep.subr.mxu0 0.0
    %264 = vmatpush1.msra.mxu0 0.0
    %265 = vmatprep.subr.mxu0 %v127
    %266 = vmatpush1.msra.mxu0 %v125
    %267 = vmatprep.subr.mxu0 %v121
    %268 = vmatpush1.msra.mxu0 %v119
    %269 = vmatprep.subr.mxu0 0.0
    %270 = vmatpush2.msra.mxu0 0.0
    %271 = vmatprep.subr.mxu0 0.0
    %272 = vmatpush2.msra.mxu0 0.0
    %273 = vmatprep.subr.mxu0 0.0
    %274 = vmatpush2.msra.mxu0 0.0
    %275 = vmatprep.subr.mxu0 0.0
    %276 = vmatpush2.msra.mxu0 0.0
    %277 = vmatprep.subr.mxu0 0.0
    %278 = vmatpush2.msra.mxu0 0.0
    %279 = vmatprep.subr.mxu0 0.0
    %280 = vmatpush2.msra.mxu0 0.0
    %281 = vmatprep.subr.mxu0 0.0
    %282 = vmatpush2.msra.mxu0 0.0
    %283 = vmatprep.subr.mxu0 0.0
    %284 = vmatpush2.msra.mxu0 0.0
    %285 = vmatprep.subr.mxu0 0.0
    %286 = vmatpush2.msra.mxu0 0.0
    %287 = vmatprep.subr.mxu0 0.0
    %288 = vmatpush2.msra.mxu0 0.0
    %289 = vmatprep.subr.mxu0 0.0
    %290 = vmatpush2.msra.mxu0 0.0
    %291 = vmatprep.subr.mxu0 0.0
    %292 = vmatpush2.msra.mxu0 0.0
    %293 = vmatprep.subr.mxu0 0.0
    %294 = vmatpush2.msra.mxu0 0.0
    %295 = vmatprep.subr.mxu0 0.0
    %296 = vmatpush2.msra.mxu0 0.0
    %297 = vmatprep.subr.mxu0 0.0
    %298 = vmatpush2.msra.mxu0 0.0
    %299 = vmatprep.subr.mxu0 0.0
    %300 = vmatpush2.msra.mxu0 0.0
    %301 = vmatprep.mubr.f32.mxu0 0.0
    %302 = vmatmul.mubr.f32.gmra.mxu0 %v232
    %v303 = vpop.f32.mrf.mxu0
    %v304 = vadd.f32 %v213, %v303
    %v305 = vpop.f32.mrf.mxu0
    %v306 = vadd.f32 %v217, %v305
    %307 = vmatprep.mubr.f32.mxu0 0.0
    %308 = vmatmul.mubr.f32.gmra.mxu0 %v235
    %v309 = vpop.f32.mrf.mxu0
    %v310 = vadd.f32 %v213, %v309
    %v311 = vpop.f32.mrf.mxu0
    %v312 = vadd.f32 %v217, %v311
    %313 = vdwg.mxu0
    %314 = vmatprep.subr.mxu0 0.0
    %315 = vmatpush1.msra.mxu0 0.0
    %316 = vmatprep.subr.mxu0 0.0
    %317 = vmatpush1.msra.mxu0 0.0
    %318 = vmatprep.subr.mxu0 0.0
    %319 = vmatpush1.msra.mxu0 0.0
    %320 = vmatprep.subr.mxu0 0.0
    %321 = vmatpush1.msra.mxu0 0.0
    %322 = vmatprep.subr.mxu0 0.0
    %323 = vmatpush1.msra.mxu0 0.0
    %324 = vmatprep.subr.mxu0 0.0
    %325 = vmatpush1.msra.mxu0 0.0
    %326 = vmatprep.subr.mxu0 0.0
    %327 = vmatpush1.msra.mxu0 0.0
    %328 = vmatprep.subr.mxu0 0.0
    %329 = vmatpush1.msra.mxu0 0.0
    %330 = vmatprep.subr.mxu0 0.0
    %331 = vmatpush1.msra.mxu0 0.0
    %332 = vmatprep.subr.mxu0 0.0
    %333 = vmatpush1.msra.mxu0 0.0
    %334 = vmatprep.subr.mxu0 0.0
    %335 = vmatpush1.msra.mxu0 0.0
    %336 = vmatprep.subr.mxu0 0.0
    %337 = vmatpush1.msra.mxu0 0.0
    %338 = vmatprep.subr.mxu0 0.0
    %339 = vmatpush1.msra.mxu0 0.0
    %340 = vmatprep.subr.mxu0 0.0
    %341 = vmatpush1.msra.mxu0 0.0
    %342 = vmatprep.subr.mxu0 %v204
    %343 = vmatpush1.msra.mxu0 %v202
    %344 = vmatprep.subr.mxu0 %v198
    %345 = vmatpush1.msra.mxu0 %v196
    %346 = vmatprep.subr.mxu0 0.0
    %347 = vmatpush2.msra.mxu0 0.0
    %348 = vmatprep.subr.mxu0 0.0
    %349 = vmatpush2.msra.mxu0 0.0
    %350 = vmatprep.subr.mxu0 0.0
    %351 = vmatpush2.msra.mxu0 0.0
    %352 = vmatprep.subr.mxu0 0.0
    %353 = vmatpush2.msra.mxu0 0.0
    %354 = vmatprep.subr.mxu0 0.0
    %355 = vmatpush2.msra.mxu0 0.0
    %356 = vmatprep.subr.mxu0 0.0
    %357 = vmatpush2.msra.mxu0 0.0
    %358 = vmatprep.subr.mxu0 0.0
    %359 = vmatpush2.msra.mxu0 0.0
    %360 = vmatprep.subr.mxu0 0.0
    %361 = vmatpush2.msra.mxu0 0.0
    %362 = vmatprep.subr.mxu0 0.0
    %363 = vmatpush2.msra.mxu0 0.0
    %364 = vmatprep.subr.mxu0 0.0
    %365 = vmatpush2.msra.mxu0 0.0
    %366 = vmatprep.subr.mxu0 0.0
    %367 = vmatpush2.msra.mxu0 0.0
    %368 = vmatprep.subr.mxu0 0.0
    %369 = vmatpush2.msra.mxu0 0.0
    %370 = vmatprep.subr.mxu0 0.0
    %371 = vmatpush2.msra.mxu0 0.0
    %372 = vmatprep.subr.mxu0 0.0
    %373 = vmatpush2.msra.mxu0 0.0
    %374 = vmatprep.subr.mxu0 0.0
    %375 = vmatpush2.msra.mxu0 0.0
    %376 = vmatprep.subr.mxu0 0.0
    %377 = vmatpush2.msra.mxu0 0.0
    %378 = vmatprep.mubr.f32.mxu0 0.0
    %379 = vmatmul.mubr.f32.gmra.mxu0 %v232
    %v380 = vpop.f32.mrf.mxu0
    %v381 = vadd.f32 %v221, %v380
    %v382 = vpop.f32.mrf.mxu0
    %v383 = vadd.f32 %v225, %v382
    %384 = vmatprep.mubr.f32.mxu0 0.0
    %385 = vmatmul.mubr.f32.gmra.mxu0 %v235
    %v386 = vpop.f32.mrf.mxu0
    %v387 = vadd.f32 %v221, %v386
    %v388 = vpop.f32.mrf.mxu0
    %v389 = vadd.f32 %v225, %v388
    %390 = vdwg.mxu0
    %v391 = vxor.u32 %v304, 2147483648
    %v392 = vxor.u32 %v306, 2147483648
    %v393 = vxor.u32 %v310, 2147483648
    %v394 = vxor.u32 %v312, 2147483648
    %v395 = vmul.f32 %v391, 1.442695
    %v396 = vpow.pop %v395
    %v397 = vmul.f32 %v392, 1.442695
    %v398 = vpow.pop %v397
    %v399 = vmul.f32 %v393, 1.442695
    %v400 = vpow.pop %v399
    %v401 = vmul.f32 %v394, 1.442695
    %v402 = vpow.pop %v401
    %v403 = vadd.f32 %v396, 1.0
    %v404 = vadd.f32 %v398, 1.0
    %v405 = vadd.f32 %v400, 1.0
    %v406 = vadd.f32 %v402, 1.0
    %v407 = vrcp.pop %v403
    %v408 = vmul.f32 1.0, %v407
    %v409 = vrcp.pop %v404
    %v410 = vmul.f32 1.0, %v409
    %v411 = vrcp.pop %v405
    %v412 = vmul.f32 1.0, %v411
    %v413 = vrcp.pop %v406
    %v414 = vmul.f32 1.0, %v413
    %v415 = vtanh.pop %v381
    %v416 = vtanh.pop %v383
    %v417 = vtanh.pop %v387
    %v418 = vtanh.pop %v389
    %v419 = vsub.f32 1.0, %v408
    %v420 = vsub.f32 1.0, %v410
    %v421 = vsub.f32 1.0, %v412
    %v422 = vsub.f32 1.0, %v414
    %v423 = vmul.f32 %v419, %v415
    %v424 = vmul.f32 %v420, %v416
    %v425 = vmul.f32 %v421, %v417
    %v426 = vmul.f32 %v422, %v418
    %v427 = vld [vmem:[%s4] sm:$0xff]
    %v428 = vld [vmem:[%s4 + $0x8] sm:$0xff]
    %v429 = vld [vmem:[%s4 + $0x10] sm:$0xff]
    %v430 = vld [vmem:[%s4 + $0x18] sm:$0xff]
    %v431 = vld [vmem:[%s4 + $0x20] sm:$0xff]
    %v432 = vld [vmem:[%s4 + $0x28] sm:$0xff]
    %v433 = vld [vmem:[%s4 + $0x30] sm:$0xff]
    %v434 = vld [vmem:[%s4 + $0x38] sm:$0xff]
    %v435 = vld [vmem:[%s4 + $0x40] sm:$0xff]
    %v436 = vld [vmem:[%s4 + $0x48] sm:$0xff]
    %v437 = vld [vmem:[%s4 + $0x50] sm:$0xff]
    %v438 = vld [vmem:[%s4 + $0x58] sm:$0xff]
    %v439 = vld [vmem:[%s4 + $0x60] sm:$0xff]
    %v440 = vld [vmem:[%s4 + $0x68] sm:$0xff]
    %v441 = vld [vmem:[%s4 + $0x70] sm:$0xff]
    %v442 = vld [vmem:[%s4 + $0x78] sm:$0xff]
    %v443 = vld [vmem:[%s4 + $0x80] sm:$0xff]
    %v444 = vld [vmem:[%s4 + $0x88] sm:$0xff]
    %v445 = vld [vmem:[%s4 + $0x90] sm:$0xff]
    %v446 = vld [vmem:[%s4 + $0x98] sm:$0xff]
    %v447 = vld [vmem:[%s4 + $0xa0] sm:$0xff]
    %v448 = vld [vmem:[%s4 + $0xa8] sm:$0xff]
    %v449 = vld [vmem:[%s4 + $0xb0] sm:$0xff]
    %v450 = vld [vmem:[%s4 + $0xb8] sm:$0xff]
    %v451 = vld [vmem:[%s4 + $0xc0] sm:$0xff]
    %v452 = vld [vmem:[%s4 + $0xc8] sm:$0xff]
    %v453 = vld [vmem:[%s4 + $0xd0] sm:$0xff]
    %v454 = vld [vmem:[%s4 + $0xd8] sm:$0xff]
    %v455 = vld [vmem:[%s4 + $0xe0] sm:$0xff]
    %v456 = vld [vmem:[%s4 + $0xe8] sm:$0xff]
    %v457 = vld [vmem:[%s4 + $0xf0] sm:$0xff]
    %v458 = vld [vmem:[%s4 + $0xf8] sm:$0xff]
    %459 = vmatprep.subr.mxu0 0.0
    %460 = vmatpush1.msra.mxu0 %v442
    %461 = vmatprep.subr.mxu0 0.0
    %462 = vmatpush1.msra.mxu0 %v441
    %463 = vmatprep.subr.mxu0 0.0
    %464 = vmatpush1.msra.mxu0 %v440
    %465 = vmatprep.subr.mxu0 0.0
    %466 = vmatpush1.msra.mxu0 %v439
    %467 = vmatprep.subr.mxu0 0.0
    %468 = vmatpush1.msra.mxu0 %v438
    %469 = vmatprep.subr.mxu0 0.0
    %470 = vmatpush1.msra.mxu0 %v437
    %471 = vmatprep.subr.mxu0 0.0
    %472 = vmatpush1.msra.mxu0 %v436
    %473 = vmatprep.subr.mxu0 0.0
    %474 = vmatpush1.msra.mxu0 %v435
    %475 = vmatprep.subr.mxu0 0.0
    %476 = vmatpush1.msra.mxu0 %v434
    %477 = vmatprep.subr.mxu0 0.0
    %478 = vmatpush1.msra.mxu0 %v433
    %479 = vmatprep.subr.mxu0 0.0
    %480 = vmatpush1.msra.mxu0 %v432
    %481 = vmatprep.subr.mxu0 0.0
    %482 = vmatpush1.msra.mxu0 %v431
    %483 = vmatprep.subr.mxu0 0.0
    %484 = vmatpush1.msra.mxu0 %v430
    %485 = vmatprep.subr.mxu0 0.0
    %486 = vmatpush1.msra.mxu0 %v429
    %487 = vmatprep.subr.mxu0 0.0
    %488 = vmatpush1.msra.mxu0 %v428
    %489 = vmatprep.subr.mxu0 0.0
    %490 = vmatpush1.msra.mxu0 %v427
    %491 = vmatprep.subr.mxu0 0.0
    %492 = vmatpush2.msra.mxu0 %v458
    %493 = vmatprep.subr.mxu0 0.0
    %494 = vmatpush2.msra.mxu0 %v457
    %495 = vmatprep.subr.mxu0 0.0
    %496 = vmatpush2.msra.mxu0 %v456
    %497 = vmatprep.subr.mxu0 0.0
    %498 = vmatpush2.msra.mxu0 %v455
    %499 = vmatprep.subr.mxu0 0.0
    %500 = vmatpush2.msra.mxu0 %v454
    %501 = vmatprep.subr.mxu0 0.0
    %502 = vmatpush2.msra.mxu0 %v453
    %503 = vmatprep.subr.mxu0 0.0
    %504 = vmatpush2.msra.mxu0 %v452
    %505 = vmatprep.subr.mxu0 0.0
    %506 = vmatpush2.msra.mxu0 %v451
    %507 = vmatprep.subr.mxu0 0.0
    %508 = vmatpush2.msra.mxu0 %v450
    %509 = vmatprep.subr.mxu0 0.0
    %510 = vmatpush2.msra.mxu0 %v449
    %511 = vmatprep.subr.mxu0 0.0
    %512 = vmatpush2.msra.mxu0 %v448
    %513 = vmatprep.subr.mxu0 0.0
    %514 = vmatpush2.msra.mxu0 %v447
    %515 = vmatprep.subr.mxu0 0.0
    %516 = vmatpush2.msra.mxu0 %v446
    %517 = vmatprep.subr.mxu0 0.0
    %518 = vmatpush2.msra.mxu0 %v445
    %519 = vmatprep.subr.mxu0 0.0
    %520 = vmatpush2.msra.mxu0 %v444
    %521 = vmatprep.subr.mxu0 0.0
    %522 = vmatpush2.msra.mxu0 %v443
    %523 = vmatprep.mubr.f32.mxu0 %v424
    %524 = vmatmul.mubr.f32.gmra.mxu0 %v423
    %v525 = vpop.f32.mrf.mxu0
    %v526 = vadd.f32 0.0, %v525
    %v527 = vpop.f32.mrf.mxu0
    %528 = vmatprep.mubr.f32.mxu0 %v426
    %529 = vmatmul.mubr.f32.gmra.mxu0 %v425
    %v530 = vpop.f32.mrf.mxu0
    %v531 = vadd.f32 0.0, %v530
    %v532 = vpop.f32.mrf.mxu0
    %533 = vdwg.mxu0
    %v534 = vmax.f32 %v526, 0.0
    %v535 = vmax.f32 %v531, 0.0
    %v536 = vld [vmem:[%s5] sm:$0xff]
    %v537 = vld [vmem:[%s5 + $0x8] sm:$0xff]
    %v538 = vld [vmem:[%s5 + $0x10] sm:$0xff]
    %v539 = vld [vmem:[%s5 + $0x18] sm:$0xff]
    %v540 = vld [vmem:[%s6] sm:$0x1]
    %v542 = vlaneseq
    %v543 = vshrl.u32 %v542, 7
    %v544 = vsub.s32 0, %v543
    %v545 = vrot.slane %v540, %v544
    %v548 = vsel %vm45, %v534, 0
    %v551 = vsel %vm45, %v535, 0
    %553 = vmatprep.subr.mxu0 0.0
    %554 = vmatpush1.msra.mxu0 0.0
    %555 = vmatprep.subr.mxu0 0.0
    %556 = vmatpush1.msra.mxu0 0.0
    %557 = vmatprep.subr.mxu0 0.0
    %558 = vmatpush1.msra.mxu0 0.0
    %559 = vmatprep.subr.mxu0 0.0
    %560 = vmatpush1.msra.mxu0 0.0
    %561 = vmatprep.subr.mxu0 0.0
    %562 = vmatpush1.msra.mxu0 0.0
    %563 = vmatprep.subr.mxu0 0.0
    %564 = vmatpush1.msra.mxu0 0.0
    %565 = vmatprep.subr.mxu0 0.0
    %566 = vmatpush1.msra.mxu0 0.0
    %567 = vmatprep.subr.mxu0 0.0
    %568 = vmatpush1.msra.mxu0 0.0
    %569 = vmatprep.subr.mxu0 0.0
    %570 = vmatpush1.msra.mxu0 0.0
    %571 = vmatprep.subr.mxu0 0.0
    %572 = vmatpush1.msra.mxu0 0.0
    %573 = vmatprep.subr.mxu0 0.0
    %574 = vmatpush1.msra.mxu0 0.0
    %575 = vmatprep.subr.mxu0 0.0
    %576 = vmatpush1.msra.mxu0 0.0
    %577 = vmatprep.subr.mxu0 0.0
    %578 = vmatpush1.msra.mxu0 %v539
    %579 = vmatprep.subr.mxu0 0.0
    %580 = vmatpush1.msra.mxu0 %v538
    %581 = vmatprep.subr.mxu0 0.0
    %582 = vmatpush1.msra.mxu0 %v537
    %583 = vmatprep.subr.mxu0 0.0
    %584 = vmatpush1.msra.mxu0 %v536
    %585 = vmatprep.subr.mxu0 0.0
    %586 = vmatpush2.msra.mxu0 0.0
    %587 = vmatprep.subr.mxu0 0.0
    %588 = vmatpush2.msra.mxu0 0.0
    %589 = vmatprep.subr.mxu0 0.0
    %590 = vmatpush2.msra.mxu0 0.0
    %591 = vmatprep.subr.mxu0 0.0
    %592 = vmatpush2.msra.mxu0 0.0
    %593 = vmatprep.subr.mxu0 0.0
    %594 = vmatpush2.msra.mxu0 0.0
    %595 = vmatprep.subr.mxu0 0.0
    %596 = vmatpush2.msra.mxu0 0.0
    %597 = vmatprep.subr.mxu0 0.0
    %598 = vmatpush2.msra.mxu0 0.0
    %599 = vmatprep.subr.mxu0 0.0
    %600 = vmatpush2.msra.mxu0 0.0
    %601 = vmatprep.subr.mxu0 0.0
    %602 = vmatpush2.msra.mxu0 0.0
    %603 = vmatprep.subr.mxu0 0.0
    %604 = vmatpush2.msra.mxu0 0.0
    %605 = vmatprep.subr.mxu0 0.0
    %606 = vmatpush2.msra.mxu0 0.0
    %607 = vmatprep.subr.mxu0 0.0
    %608 = vmatpush2.msra.mxu0 0.0
    %609 = vmatprep.subr.mxu0 0.0
    %610 = vmatpush2.msra.mxu0 0.0
    %611 = vmatprep.subr.mxu0 0.0
    %612 = vmatpush2.msra.mxu0 0.0
    %613 = vmatprep.subr.mxu0 0.0
    %614 = vmatpush2.msra.mxu0 0.0
    %615 = vmatprep.subr.mxu0 0.0
    %616 = vmatpush2.msra.mxu0 0.0
    %617 = vmatprep.mubr.f32.mxu0 0.0
    %618 = vmatmul.mubr.f32.gmra.mxu0 %v548
    %v619 = vpop.f32.mrf.mxu0
    %v620 = vadd.f32 %v545, %v619
    %v621 = vpop.f32.mrf.mxu0
    %622 = vmatprep.mubr.f32.mxu0 0.0
    %623 = vmatmul.mubr.f32.gmra.mxu0 %v551
    %v624 = vpop.f32.mrf.mxu0
    %v625 = vadd.f32 %v545, %v624
    %v626 = vpop.f32.mrf.mxu0
    %627 = vdwg.mxu0
    %628 = vst [vmem:[#allocation2] sm:$0xff] %v620
    %629 = vst [vmem:[#allocation2 + $0x8] sm:$0xff] %v625
    // Predicated region
    $region30: #{tpu_custom_call.1} parent=1 // pred_check
      _
    $region31: #{tpu_custom_call.1} parent=1 // pred_check_branch
      %631 = sbr.rel (0) target = $region33
    $region32: #{tpu_custom_call.1} parent=1 // pred_region
      %s633 = ssub.s32 256, 256
      %634 = vsyncadd [#allocation3], %s633
      %s635 = sshll.u32 [#allocation2], 4
      %s636 = int_to_ptr.vmem [resolvable:$true] %s635
      %641 = dma.vmem_to_hbm [thread:$0]  %s636, 256, %s7, [#allocation3], 128, 128, 8
    $region33: #{tpu_custom_call.1} parent=1 // pred_fallthru
      _
    // Predicated region
    $region34: #{tpu_custom_call.1} parent=1 // pred_check
      _
    $region35: #{tpu_custom_call.1} parent=1 // pred_check_branch
      %643 = sbr.rel (0) target = $region37
    $region36: #{tpu_custom_call.1} parent=1 // pred_region
      %644 = dma.done [#allocation3], 256
    $region37: #{tpu_custom_call.1} parent=1 // pred_fallthru
      _
    %645 = vsyncpa [#allocation3], 1

</llo_original>
